<compile_context>
chip_gen: v7x
topology: tpu7x:2x2x1
jax: 0.10.0
libtpu: 0.0.40
codegen_flags: <defaults>
</compile_context>

<pallas_src>
import functools
import math

import jax
import jax.numpy as jnp
from jax import lax
from jax.experimental import pallas as pl
from jax.experimental.pallas import tpu as pltpu

_LANES = 128
_SUBLANES = 8


def _round_up(x, m):
    return ((x + m - 1) // m) * m


def _num_tensorcores():
    """Number of TensorCores sharing this chip's HBM (2 on v7x, 1 on v5e/v6e)."""
    try:
        info = pltpu.get_tpu_info()
        for name in ("num_cores", "num_tensorcores", "tensorcore_count", "cores_per_chip"):
            v = getattr(info, name, None)
            if isinstance(v, int) and v >= 1:
                return v
    except Exception:
        pass
    try:
        kind = jax.devices()[0].device_kind.lower()
        if "v7" in kind:
            return 2
    except Exception:
        pass
    return 1


def _focal_loss_kernel(pred_ref, target_ref, out_ref, *,
                       gamma, block_rows, rows, tiles, tiles_per_split, num_splits):
    s = pl.program_id(0)                 # split (one per TensorCore; "parallel")
    i = pl.program_id(1)                 # reduction tile within a split ("arbitrary")
    t = s * tiles_per_split + i          # logical row-tile index (>= tiles for phantom tiles)

    @pl.when(i == 0)
    def _():
        out_ref[...] = jnp.zeros_like(out_ref)

    logits = pred_ref[...].astype(jnp.float32)
    labels = target_ref[...].astype(jnp.float32)

    # Stable log-sigmoid path, 2 EUP transcendentals / element:
    #   log p      = min(x, 0) - log(1 + exp(-|x|))
    #   log(1 - p) = log p - x
    #   p          = 1 / (1 + exp(-|x|))  for x >= 0, else 1 - that  (reuses e, no 3rd exp).
    e = jnp.exp(-jnp.abs(logits))
    softplus = jnp.log(1.0 + e)
    log_p = jnp.minimum(logits, 0.0) - softplus
    log_1mp = log_p - logits
    r = pl.reciprocal(1.0 + e, approx=False)
    p = jnp.where(logits >= 0.0, r, 1.0 - r)

    # PyTorch F.binary_cross_entropy clamps the log terms at -100.
    log_p_c = jnp.maximum(log_p, -100.0)
    log_1mp_c = jnp.maximum(log_1mp, -100.0)
    bce = -(log_1mp_c + labels * (log_p_c - log_1mp_c))

    # 1 - pt  with  pt = t*p + (1-t)*(1-p)   ==>   1 - pt = p + t*(1 - 2p)
    one_m_pt = p + labels * (1.0 - 2.0 * p)

    g = float(gamma)
    if g.is_integer() and 0 <= int(g) <= 4:
        gi = int(g)
        if gi == 0:
            focal_term = jnp.ones_like(one_m_pt)
        else:
            focal_term = one_m_pt
            for _ in range(gi - 1):      # gamma=2 -> a single VPU multiply, no pow
                focal_term = focal_term * one_m_pt
    else:
        focal_term = one_m_pt ** g
    focal = focal_term * bce             # alpha is applied to the final scalar in the wrapper

    def fold(x):
        out_ref[...] += jnp.sum(
            x.reshape(block_rows // _SUBLANES, _SUBLANES, _LANES), axis=0
        ).reshape(1, _SUBLANES, _LANES)

    ragged = (rows % block_rows) != 0                    # last real tile overruns `rows`
    phantom = (num_splits * tiles_per_split) > tiles     # grid has tiles past the last real one

    if not ragged and not phantom:
        fold(focal)                                      # common case: no masking at all
    else:
        last = tiles - 1
        valid_last = rows - last * block_rows            # rows valid in the last real tile

        @pl.when(t < last)
        def _():
            fold(focal)                                  # interior tiles: no masking

        @pl.when(t >= last)
        def _():
            # Last real tile keeps its first `valid_last` rows; phantom tiles keep none.
            limit = jnp.where(t == last, valid_last, 0)
            row_iota = lax.broadcasted_iota(jnp.int32, focal.shape, 0)
            fold(jnp.where(row_iota < limit, focal, 0.0))


def focal_loss(pred, target, alpha=0.25, gamma=2, *, block_rows=4096, num_splits=None):
    """pred, target: same-shape logits / labels (e.g. (B, C, H, W)) -> scalar mean focal loss."""
    assert pred.shape == target.shape
    total_n = math.prod(pred.shape)
    assert total_n > 0

    pred_flat = pred.reshape(-1)
    target_flat = target.reshape(-1)

    # Rare fallback only: a sub-128 tail is padded with "neutral" elements (pred=+100,
    # target=1) whose focal contribution is exactly 0, so no in-kernel mask is needed for it.
    # When total_n % 128 == 0 (common case) no pad / copy of the inputs happens at all.
    tail = total_n % _LANES
    if tail:
        pad = _LANES - tail
        pred_flat = jnp.pad(pred_flat, (0, pad), constant_values=100.0)
        target_flat = jnp.pad(target_flat, (0, pad), constant_values=1.0)
    rows = (total_n + (_LANES - tail) % _LANES) // _LANES

    pred2 = pred_flat.reshape(rows, _LANES)       # zero-copy reshape when tail == 0
    target2 = target_flat.reshape(rows, _LANES)

    block_rows_eff = min(_round_up(block_rows, _SUBLANES), _round_up(rows, _SUBLANES))
    tiles = pl.cdiv(rows, block_rows_eff)

    if num_splits is None:
        num_splits = _num_tensorcores()           # 2 on v7x (dual TC), 1 on v5e / v6e
    num_splits = max(1, min(int(num_splits), tiles))
    tiles_per_split = pl.cdiv(tiles, num_splits)

    def in_index_map(s, i):
        # Clamp so phantom tiles (grid rounded up to num_splits) never DMA out of bounds.
        return (jnp.minimum(s * tiles_per_split + i, tiles - 1), 0)

    kernel = functools.partial(
        _focal_loss_kernel,
        gamma=gamma, block_rows=block_rows_eff, rows=rows,
        tiles=tiles, tiles_per_split=tiles_per_split, num_splits=num_splits)

    in_bytes = pred2.size * pred2.dtype.itemsize + target2.size * target2.dtype.itemsize
    cost = pl.CostEstimate(
        flops=18 * rows * _LANES,
        transcendentals=3 * rows * _LANES,
        bytes_accessed=in_bytes + num_splits * _SUBLANES * _LANES * 4)

    partials = pl.pallas_call(
        kernel,
        out_shape=jax.ShapeDtypeStruct((num_splits, _SUBLANES, _LANES), jnp.float32),
        grid_spec=pltpu.PrefetchScalarGridSpec(
            num_scalar_prefetch=0,
            grid=(num_splits, tiles_per_split),
            in_specs=[
                pl.BlockSpec((block_rows_eff, _LANES), in_index_map),
                pl.BlockSpec((block_rows_eff, _LANES), in_index_map),
            ],
            out_specs=pl.BlockSpec((1, _SUBLANES, _LANES), lambda s, i: (s, 0, 0)),
        ),
        compiler_params=pltpu.CompilerParams(
            dimension_semantics=("parallel", "arbitrary"),
            vmem_limit_bytes=48 * 1024 * 1024,
        ),
        cost_estimate=cost,
    )(pred2, target2)

    # Single tiny cross-lane reduction; alpha and the mean over the REAL element count are
    # applied once to the scalar instead of per-element inside the kernel.
    return (float(alpha) * jnp.sum(partials) / total_n).astype(jnp.float32)


if __name__ == "__main__":
    key = jax.random.PRNGKey(0)
    k1, k2, k3, k4 = jax.random.split(key, 4)

    def reference(pred, target, alpha=0.25, gamma=2):
        # Pure-JAX mirror of the PyTorch module (BCE clamps log terms at -100).
        p = jax.nn.sigmoid(pred)
        t = target
        log_p = jnp.maximum(jnp.log(p), -100.0)
        log_1mp = jnp.maximum(jnp.log(1.0 - p), -100.0)
        bce = -(t * log_p + (1.0 - t) * log_1mp)
        pt = t * p + (1.0 - t) * (1.0 - p)
        return jnp.mean(alpha * (1.0 - pt) ** gamma * bce)

    # Main example: (B, C, H, W) = (2, 4, 16, 16) logits / binary labels.
    B, C, H, W = 2, 4, 16, 16
    pred = jax.random.normal(k1, (B, C, H, W), dtype=jnp.float32)
    target = (jax.random.uniform(k2, (B, C, H, W)) > 0.5).astype(jnp.float32)

    loss = focal_loss(pred, target, alpha=0.25, gamma=2)
    jax.block_until_ready(loss)
    ref = reference(pred, target)
    assert jnp.allclose(loss, ref, rtol=1e-4, atol=1e-6), (loss, ref)

    # Exercise the ragged-last-tile + phantom-tile + multi-split path with a tiny block size.
    pred_b = jax.random.normal(k3, (2, 5, 16, 16), dtype=jnp.float32)
    target_b = (jax.random.uniform(k4, (2, 5, 16, 16)) > 0.5).astype(jnp.float32)
    loss_b = focal_loss(pred_b, target_b, alpha=0.25, gamma=2, block_rows=8, num_splits=2)
    jax.block_until_ready(loss_b)
    ref_b = reference(pred_b, target_b)
    assert jnp.allclose(loss_b, ref_b, rtol=1e-4, atol=1e-6), (loss_b, ref_b)

    print("KERNEL_OK")
</pallas_src>

<mosaic_0001>
module attributes {stable_mosaic.version = 11 : i64} {
  func.func @_focal_loss_kernel(%arg0: i32, %arg1: i32, %arg2: memref<16x128xf32, #tpu.memory_space<vmem>>, %arg3: memref<16x128xf32, #tpu.memory_space<vmem>>, %arg4: memref<1x8x128xf32, #tpu.memory_space<vmem>>) attributes {dimension_semantics = [#tpu.dimension_semantics<parallel>, #tpu.dimension_semantics<arbitrary>], iteration_bounds = array<i64: 1, 1>, scalar_prefetch = 0 : i64, scratch_operands = 0 : i64, tpu.core_type = #tpu.core_type<tc>, window_params = [{transform_indices = @transform_0, window_bounds = array<i64: 16, 128>}, {transform_indices = @transform_1, window_bounds = array<i64: 16, 128>}, {transform_indices = @transform_2, window_bounds = array<i64: 1, 8, 128>}]} {
    %c0_i32 = arith.constant 0 : i32
    %0 = arith.cmpi eq, %arg1, %c0_i32 : i32
    %1 = arith.extui %0 : i1 to i32
    %c0_i32_0 = arith.constant 0 : i32
    %2 = arith.cmpi ne, %1, %c0_i32_0 : i32
    scf.if %2 {
      %cst_21 = arith.constant 0.000000e+00 : f32
      %47 = vector.broadcast %cst_21 : f32 to vector<1x8x128xf32>
      %c0_22 = arith.constant 0 : index
      %c0_23 = arith.constant 0 : index
      %c0_24 = arith.constant 0 : index
      %48 = vector.load %arg4[%c0_22, %c0_23, %c0_24] : memref<1x8x128xf32, #tpu.memory_space<vmem>>, vector<1x8x128xf32>
      tpu.vector_store %arg4[%c0_22, %c0_23, %c0_24], %47 {strides = array<i32>} : memref<1x8x128xf32, #tpu.memory_space<vmem>>, vector<1x8x128xf32>,
    } else {
    }
    %c0 = arith.constant 0 : index
    %c0_1 = arith.constant 0 : index
    %3 = vector.load %arg2[%c0, %c0_1] : memref<16x128xf32, #tpu.memory_space<vmem>>, vector<16x128xf32>
    %c0_2 = arith.constant 0 : index
    %c0_3 = arith.constant 0 : index
    %4 = vector.load %arg3[%c0_2, %c0_3] : memref<16x128xf32, #tpu.memory_space<vmem>>, vector<16x128xf32>
    %5 = math.absf %3 : vector<16x128xf32>
    %cst = arith.constant 0.000000e+00 : f32
    %6 = vector.broadcast %cst : f32 to vector<16x128xf32>
    %7 = arith.subf %6, %5 : vector<16x128xf32>
    %8 = math.exp %7 : vector<16x128xf32>
    %cst_4 = arith.constant 1.000000e+00 : f32
    %9 = vector.broadcast %cst_4 : f32 to vector<16x128xf32>
    %10 = arith.addf %9, %8 : vector<16x128xf32>
    %11 = math.log %10 : vector<16x128xf32>
    %cst_5 = arith.constant 0.000000e+00 : f32
    %12 = vector.broadcast %cst_5 : f32 to vector<16x128xf32>
    %13 = arith.minimumf %3, %12 : vector<16x128xf32>
    %14 = arith.subf %13, %11 : vector<16x128xf32>
    %15 = arith.subf %14, %3 : vector<16x128xf32>
    %cst_6 = arith.constant 1.000000e+00 : f32
    %16 = vector.broadcast %cst_6 : f32 to vector<16x128xf32>
    %17 = arith.addf %16, %8 : vector<16x128xf32>
    %18 = tpu.reciprocal %17 : vector<16x128xf32> -> vector<16x128xf32>
    %cst_7 = arith.constant 0.000000e+00 : f32
    %19 = vector.broadcast %cst_7 : f32 to vector<16x128xf32>
    %20 = arith.cmpf oge, %3, %19 : vector<16x128xf32>
    %cst_8 = arith.constant 1.000000e+00 : f32
    %21 = vector.broadcast %cst_8 : f32 to vector<16x128xf32>
    %22 = arith.subf %21, %18 : vector<16x128xf32>
    %23 = arith.select %20, %18, %22 : vector<16x128xi1>, vector<16x128xf32>
    %cst_9 = arith.constant -1.000000e+02 : f32
    %24 = vector.broadcast %cst_9 : f32 to vector<16x128xf32>
    %25 = arith.maximumf %14, %24 : vector<16x128xf32>
    %cst_10 = arith.constant -1.000000e+02 : f32
    %26 = vector.broadcast %cst_10 : f32 to vector<16x128xf32>
    %27 = arith.maximumf %15, %26 : vector<16x128xf32>
    %28 = arith.subf %25, %27 : vector<16x128xf32>
    %29 = arith.mulf %4, %28 : vector<16x128xf32>
    %30 = arith.addf %27, %29 : vector<16x128xf32>
    %cst_11 = arith.constant 0.000000e+00 : f32
    %31 = vector.broadcast %cst_11 : f32 to vector<16x128xf32>
    %32 = arith.subf %31, %30 : vector<16x128xf32>
    %cst_12 = arith.constant 2.000000e+00 : f32
    %33 = vector.broadcast %cst_12 : f32 to vector<16x128xf32>
    %34 = arith.mulf %33, %23 : vector<16x128xf32>
    %cst_13 = arith.constant 1.000000e+00 : f32
    %35 = vector.broadcast %cst_13 : f32 to vector<16x128xf32>
    %36 = arith.subf %35, %34 : vector<16x128xf32>
    %37 = arith.mulf %4, %36 : vector<16x128xf32>
    %38 = arith.addf %23, %37 : vector<16x128xf32>
    %39 = arith.mulf %38, %38 : vector<16x128xf32>
    %40 = arith.mulf %39, %32 : vector<16x128xf32>
    %c0_14 = arith.constant 0 : index
    %c0_15 = arith.constant 0 : index
    %c0_16 = arith.constant 0 : index
    %41 = vector.load %arg4[%c0_14, %c0_15, %c0_16] : memref<1x8x128xf32, #tpu.memory_space<vmem>>, vector<1x8x128xf32>
    %42 = vector.shape_cast %40 : vector<16x128xf32> to vector<2x8x128xf32>
    %cst_17 = arith.constant dense<0.000000e+00> : vector<8x128xf32>
    %43 = vector.multi_reduction <add>, %42, %cst_17 [0] : vector<2x8x128xf32> to vector<8x128xf32>
    %44 = vector.shape_cast %43 : vector<8x128xf32> to vector<1x8x128xf32>
    %45 = arith.addf %41, %44 : vector<1x8x128xf32>
    %c0_18 = arith.constant 0 : index
    %c0_19 = arith.constant 0 : index
    %c0_20 = arith.constant 0 : index
    %46 = vector.load %arg4[%c0_18, %c0_19, %c0_20] : memref<1x8x128xf32, #tpu.memory_space<vmem>>, vector<1x8x128xf32>
    tpu.vector_store %arg4[%c0_18, %c0_19, %c0_20], %45 {strides = array<i32>} : memref<1x8x128xf32, #tpu.memory_space<vmem>>, vector<1x8x128xf32>,
    return
  }
  func.func @transform_0(%arg0: i32, %arg1: i32) -> (i32, i32) {
    %c1_i32 = arith.constant 1 : i32
    %0 = arith.muli %arg0, %c1_i32 : i32
    %1 = arith.addi %0, %arg1 : i32
    %c0_i32 = arith.constant 0 : i32
    %2 = arith.minsi %1, %c0_i32 : i32
    %c0_i32_0 = arith.constant 0 : i32
    %c0_i32_1 = arith.constant 0 : i32
    return %2, %c0_i32_0 : i32, i32
  }
  func.func @transform_1(%arg0: i32, %arg1: i32) -> (i32, i32) {
    %c1_i32 = arith.constant 1 : i32
    %0 = arith.muli %arg0, %c1_i32 : i32
    %1 = arith.addi %0, %arg1 : i32
    %c0_i32 = arith.constant 0 : i32
    %2 = arith.minsi %1, %c0_i32 : i32
    %c0_i32_0 = arith.constant 0 : i32
    %c0_i32_1 = arith.constant 0 : i32
    return %2, %c0_i32_0 : i32, i32
  }
  func.func @transform_2(%arg0: i32, %arg1: i32) -> (i32, i32, i32) {
    %c0_i32 = arith.constant 0 : i32
    %c0_i32_0 = arith.constant 0 : i32
    %c0_i32_1 = arith.constant 0 : i32
    return %arg0, %c0_i32, %c0_i32_0 : i32, i32, i32
  }
}

</mosaic_0001>

<llo_original>
// kernel: tpu_custom_call.1
$region0: #{tpu_custom_call.1}
  #allocation0 [shape = 'u32[]', space=smem, size = 0x4, offset = 0x4, fixed_abs, tag = 'smem constant byte address 0x4 - core index']
  #allocation1 [shape = 'u32[144,128]{1,0:T(1,128)}', space=vmem, size = 0x12000, scoped, tag = 'internal scratch']
  %s0 = inlined_call_operand.hbm [shape: f32[16,128], index: 0, kind: input, shape index: {}]
  %s1 = inlined_call_operand.hbm [shape: f32[16,128], index: 1, kind: input, shape index: {}]
  %s2 = inlined_call_operand.hbm [shape: f32[1,8,128], index: 2, kind: output, shape index: {}]
  %s3 = sld [smem:[#allocation0]]
  $region30: #{tpu_custom_call.1} parent=0
    _
  %s5 = ssub.s32 1, %s3
  %s6 = scalar_select 0, %s5, %s3
  $region1: #{tpu_custom_call.1} parent=0
    #allocation2 [shape = 'u8[8192]{0}', space=vmem, size = 0x2000, scoped, tag = 'input window, operand 0, single buffered']
    #allocation3 [shape = 's32[1]{0}', space=sflag, size = 0x4, scoped, tag = 'scoped memory for tpu_custom_call.1']
    #allocation4 [shape = 's32[1]{0}', space=sflag, size = 0x4, scoped, tag = 'scoped memory for tpu_custom_call.1']
    #allocation5 [shape = 'u8[8192]{0}', space=vmem, size = 0x2000, scoped, tag = 'input window, operand 1, single buffered']
    #allocation6 [shape = 's32[1]{0}', space=sflag, size = 0x4, scoped, tag = 'scoped memory for tpu_custom_call.1']
    #allocation7 [shape = 'u8[4096]{0}', space=vmem, size = 0x1000, scoped, tag = 'output window, operand 0, single buffered']
    %7 = vsyncpa [#allocation3], 0
    %8 = vsyncpa [#allocation6], 0
    %9 = vsyncpa [#allocation4], 0
    // Predicated region
    $region2: #{tpu_custom_call.1} parent=1 // pred_check
      _
    $region3: #{tpu_custom_call.1} parent=1 // pred_check_branch
      %11 = sbr.rel (0) target = $region5
    $region4: #{tpu_custom_call.1} parent=1 // pred_region
      %s12 = sadd.s32 0, 0
      %p13 = scmp.lt.s32.totalorder %s12, 0
      %s14 = scalar_select %p13, %s12, 0
      %s15 = smul.u32 2, %s14
      %s17 = ssub.s32 256, 256
      %18 = vsyncadd [#allocation3], %s17
      %s19 = smul.addr %s15, 128
      %s20 = scalar_lea.hbm %s0, %s19
      %s21 = sshll.u32 [#allocation2], 4
      %s22 = int_to_ptr.vmem [resolvable:$true] %s21
      %27 = dma.hbm_to_vmem [thread:$0]  %s20, 256, %s22, [#allocation3], 128, 128, 8
    $region5: #{tpu_custom_call.1} parent=1 // pred_fallthru
      _
    // Predicated region
    $region6: #{tpu_custom_call.1} parent=1 // pred_check
      _
    $region7: #{tpu_custom_call.1} parent=1 // pred_check_branch
      %29 = sbr.rel (0) target = $region9
    $region8: #{tpu_custom_call.1} parent=1 // pred_region
      %s30 = sadd.s32 0, 0
      %p31 = scmp.lt.s32.totalorder %s30, 0
      %s32 = scalar_select %p31, %s30, 0
      %s33 = smul.u32 2, %s32
      %s35 = ssub.s32 256, 256
      %36 = vsyncadd [#allocation6], %s35
      %s37 = smul.addr %s33, 128
      %s38 = scalar_lea.hbm %s1, %s37
      %s39 = sshll.u32 [#allocation5], 4
      %s40 = int_to_ptr.vmem [resolvable:$true] %s39
      %45 = dma.hbm_to_vmem [thread:$0]  %s38, 256, %s40, [#allocation6], 128, 128, 8
    $region9: #{tpu_custom_call.1} parent=1 // pred_fallthru
      _
    // Predicated region
    $region10: #{tpu_custom_call.1} parent=1 // pred_check
      _
    $region11: #{tpu_custom_call.1} parent=1 // pred_check_branch
      %47 = sbr.rel (0) target = $region13
    $region12: #{tpu_custom_call.1} parent=1 // pred_region
      %48 = dma.done [#allocation3], 256
    $region13: #{tpu_custom_call.1} parent=1 // pred_fallthru
      _
    // Predicated region
    $region14: #{tpu_custom_call.1} parent=1 // pred_check
      _
    $region15: #{tpu_custom_call.1} parent=1 // pred_check_branch
      %50 = sbr.rel (0) target = $region17
    $region16: #{tpu_custom_call.1} parent=1 // pred_region
      %51 = dma.done [#allocation6], 256
    $region17: #{tpu_custom_call.1} parent=1 // pred_fallthru
      _
    %s52 = sadd.s32 0, 0
    %p53 = scmp.lt.s32.totalorder %s52, 0
    %s54 = scalar_select %p53, %s52, 0
    %s55 = smul.u32 2, %s54
    %s56 = sadd.s32 0, 0
    %p57 = scmp.lt.s32.totalorder %s56, 0
    %s58 = scalar_select %p57, %s56, 0
    %s59 = smul.u32 2, %s58
    %p60 = scmp.eq.s32.totalorder 0, 0
    // Predicated region
    $region18: #{tpu_custom_call.1} parent=1 // pred_check
      %p61 = pneg %p60
    $region19: #{tpu_custom_call.1} parent=1 // pred_check_branch
      %63 = sbr.rel (%p61) target = $region21
    $region20: #{tpu_custom_call.1} parent=1 // pred_region
      %64 = vst [vmem:[#allocation7] sm:$0xff] 0.0
    $region21: #{tpu_custom_call.1} parent=1 // pred_fallthru
      _
    %v65 = vld [vmem:[#allocation2] sm:$0xff]
    %v66 = vld [vmem:[#allocation2 + $0x8] sm:$0xff]
    %v67 = vld [vmem:[#allocation5] sm:$0xff]
    %v68 = vld [vmem:[#allocation5 + $0x8] sm:$0xff]
    %v69 = vand.u32 2147483647, %v65
    %v70 = vand.u32 2147483647, %v66
    %v71 = vsub.f32 0.0, %v69
    %v72 = vsub.f32 0.0, %v70
    %v73 = vmul.f32 %v71, 1.442695
    %v74 = vpow.pop %v73
    %v75 = vmul.f32 %v72, 1.442695
    %v76 = vpow.pop %v75
    %v77 = vadd.f32 %v74, 1.0
    %v78 = vadd.f32 %v76, 1.0
    %v79 = vlog2.pop %v77
    %v80 = vmul.f32 %v79, 0.6931472
    %v81 = vlog2.pop %v78
    %v82 = vmul.f32 %v81, 0.6931472
    %v83 = vmin.f32 %v65, 0.0
    %v84 = vmin.f32 %v66, 0.0
    %v85 = vsub.f32 %v83, %v80
    %v86 = vsub.f32 %v84, %v82
    %v87 = vsub.f32 %v85, %v65
    %v88 = vsub.f32 %v86, %v66
    %v89 = vrcp.pop %v77
    %v90 = vrcp.pop %v78
    %vm91 = vcmp.ge.f32.partialorder %v65, 0.0
    %vm92 = vcmp.ge.f32.partialorder %v66, 0.0
    %v93 = vsub.f32 1.0, %v89
    %v94 = vsub.f32 1.0, %v90
    %v95 = vsel %vm91, %v89, %v93
    %v96 = vsel %vm92, %v90, %v94
    %v97 = vmax.f32 %v85, -100.0
    %v98 = vmax.f32 %v86, -100.0
    %v99 = vmax.f32 %v87, -100.0
    %v100 = vmax.f32 %v88, -100.0
    %v101 = vsub.f32 %v97, %v99
    %v102 = vsub.f32 %v98, %v100
    %v103 = vmul.f32 %v67, %v101
    %v104 = vmul.f32 %v68, %v102
    %v105 = vadd.f32 %v99, %v103
    %v106 = vadd.f32 %v100, %v104
    %v107 = vsub.f32 0.0, %v105
    %v108 = vsub.f32 0.0, %v106
    %v109 = vmul.f32 %v95, 2.0
    %v110 = vmul.f32 %v96, 2.0
    %v111 = vsub.f32 1.0, %v109
    %v112 = vsub.f32 1.0, %v110
    %v113 = vmul.f32 %v67, %v111
    %v114 = vmul.f32 %v68, %v112
    %v115 = vadd.f32 %v95, %v113
    %v116 = vadd.f32 %v96, %v114
    %v117 = vmul.f32 %v115, %v115
    %v118 = vmul.f32 %v116, %v116
    %v119 = vmul.f32 %v117, %v107
    %v120 = vmul.f32 %v118, %v108
    %v121 = vld [vmem:[#allocation7] sm:$0xff]
    %v122 = vadd.f32 %v119, %v120
    %v123 = vadd.f32 %v121, %v122
    %124 = vst [vmem:[#allocation7] sm:$0xff] %v123
    // Predicated region
    $region22: #{tpu_custom_call.1} parent=1 // pred_check
      _
    $region23: #{tpu_custom_call.1} parent=1 // pred_check_branch
      %126 = sbr.rel (0) target = $region25
    $region24: #{tpu_custom_call.1} parent=1 // pred_region
      %s128 = ssub.s32 128, 128
      %129 = vsyncadd [#allocation4], %s128
      %s131 = sshll.u32 [#allocation7], 4
      %s132 = int_to_ptr.vmem [resolvable:$true] %s131
      %134 = dma.vmem_to_hbm [thread:$0]  %s132, 128, %s2, [#allocation4]
    $region25: #{tpu_custom_call.1} parent=1 // pred_fallthru
      _
    // Predicated region
    $region26: #{tpu_custom_call.1} parent=1 // pred_check
      _
    $region27: #{tpu_custom_call.1} parent=1 // pred_check_branch
      %136 = sbr.rel (0) target = $region29
    $region28: #{tpu_custom_call.1} parent=1 // pred_region
      %137 = dma.done [#allocation4], 128
    $region29: #{tpu_custom_call.1} parent=1 // pred_fallthru
      _
    %138 = vsyncpa [#allocation3], 1
    %139 = vsyncpa [#allocation6], 1
    %140 = vsyncpa [#allocation4], 1

</llo_original>
